<compile_context>
chip_gen: v6e
topology: v6e:2x2x1
jax: 0.10.0
libtpu: 0.0.40
codegen_flags: <defaults>
</compile_context>

<pallas_src>
import functools
import math

import jax
import jax.numpy as jnp
from jax import lax
from jax.experimental import pallas as pl
from jax.experimental.pallas import tpu as pltpu


def _lcm(a, b):
    return a * b // math.gcd(a, b)


# ---------------------------------------------------------------------------
# Phase 1: per-lane sum of |w| accumulated over all row tiles.
# ---------------------------------------------------------------------------
def _sum_abs_kernel(w_ref, sum_ref, *, valid_rows, tile_rows):
    i = pl.program_id(0)

    @pl.when(i == 0)
    def _init():
        sum_ref[...] = jnp.zeros_like(sum_ref)

    # Mask rows of a (possibly) partial last tile: reads past the array hold garbage.
    remaining = valid_rows - i * tile_rows
    row_id = lax.broadcasted_iota(jnp.int32, w_ref.shape, 0)
    absw = jnp.where(row_id < remaining, jnp.abs(w_ref[...]), 0.0)
    sum_ref[...] += jnp.sum(absw, axis=0, keepdims=True)


# ---------------------------------------------------------------------------
# Phase 2: noise = k*wn ; noisy_un = (1-f)*w + noise ; per-lane max(|noisy_un|).
#   params_ref[0, :] = factor * clean_amp per lane
#   params_ref[1, :] = broadcast of (1 - factor)
# ---------------------------------------------------------------------------
def _mix_kernel(params_ref, w_ref, wn_ref, noise_ref, noisyu_ref, amax_ref, *,
                valid_rows, tile_rows):
    i = pl.program_id(0)

    @pl.when(i == 0)
    def _init():
        amax_ref[...] = jnp.zeros_like(amax_ref)

    k_lane = params_ref[0:1, :]            # [1, LANE]
    omf = params_ref[1:2, :]               # [1, LANE]  (1 - factor)

    noise = k_lane * wn_ref[...]
    noisy = w_ref[...] * omf + noise
    noise_ref[...] = noise
    noisyu_ref[...] = noisy

    remaining = valid_rows - i * tile_rows
    row_id = lax.broadcasted_iota(jnp.int32, noisy.shape, 0)
    absn = jnp.where(row_id < remaining, jnp.abs(noisy), 0.0)
    amax_ref[...] = jnp.maximum(amax_ref[...],
                                jnp.max(absn, axis=0, keepdims=True))


# ---------------------------------------------------------------------------
# Phase 3: noisy = noisy_un * inv_lane   (elementwise; megacore-parallel axis).
# ---------------------------------------------------------------------------
def _scale_kernel(inv_ref, noisyu_ref, out_ref):
    out_ref[...] = noisyu_ref[...] * inv_ref[...]


def add_noise(waveform, snr, white_noise, mix_draw=None, mix_prob=1.0, *,
              lane_target=512, tile_rows=256):
    """waveform: [T] or [T, C]; snr: scalar or (1,); white_noise: same shape as waveform."""
    assert tile_rows % 8 == 0
    squeeze = waveform.ndim == 1
    w2 = waveform[:, None] if squeeze else waveform          # [T, C] (free view)
    wn2 = white_noise[:, None] if squeeze else white_noise
    T, C = w2.shape

    # Lane-interleaved flat layout: flat[t*C + c]  ->  channel = lane % C.
    lane = _lcm(C, 128)
    lane *= max(1, lane_target // lane)
    n = T * C
    n_pad = pl.cdiv(n, lane) * lane

    w_flat = jnp.reshape(jnp.asarray(w2, jnp.float32), (n,))
    wn_flat = jnp.reshape(jnp.asarray(wn2, jnp.float32), (n,))
    if n_pad != n:   # only when T*C is not a multiple of `lane` (< lane zeros added)
        w_flat = jnp.pad(w_flat, (0, n_pad - n))
        wn_flat = jnp.pad(wn_flat, (0, n_pad - n))
    rows = n_pad // lane
    w_rl = w_flat.reshape(rows, lane)
    wn_rl = wn_flat.reshape(rows, lane)

    tr = tile_rows if rows > tile_rows else rows
    n_tiles = pl.cdiv(rows, tr)
    row_spec = pl.BlockSpec((tr, lane), lambda i: (i, 0))
    lane_spec = pl.BlockSpec((1, lane), lambda i: (0, 0))

    # ---- phase 1: tiled per-lane sum(|w|) ---------------------------------
    sum_lane = pl.pallas_call(
        functools.partial(_sum_abs_kernel, valid_rows=rows, tile_rows=tr),
        out_shape=jax.ShapeDtypeStruct((1, lane), jnp.float32),
        grid=(n_tiles,),
        in_specs=[row_spec],
        out_specs=lane_spec,
        compiler_params=pltpu.CompilerParams(dimension_semantics=("arbitrary",)),
    )(w_rl)

    # Tiny per-channel glue (O(lane) work only; no extra full-array HBM passes).
    clean_amp = jnp.sum(sum_lane.reshape(lane // C, C), axis=0) / jnp.float32(T)

    snr_s = jnp.asarray(snr, jnp.float32).reshape(-1)[0]
    factor = 1.0 / (10.0 ** (snr_s / 20.0) + 1.0)     # 1 / (dB_to_amplitude + 1)
    if mix_draw is not None:
        gate = jnp.asarray(mix_draw, jnp.float32).reshape(-1)[0] > mix_prob
    else:
        gate = False                                  # default mix_prob=1.0 path
    factor_eff = jnp.where(gate, 0.0, factor)         # gate -> noisy = w, noise = 0

    k_lane_row = jnp.tile(factor_eff * clean_amp, lane // C)           # [LANE]
    omf_row = jnp.broadcast_to(1.0 - factor_eff, (lane,)).astype(jnp.float32)
    params = jnp.stack([k_lane_row.astype(jnp.float32), omf_row])      # [2, LANE]

    # ---- phase 2: noise, un-normalized noisy, per-lane max(|noisy|) -------
    noise_rl, noisyu_rl, amax_lane = pl.pallas_call(
        functools.partial(_mix_kernel, valid_rows=rows, tile_rows=tr),
        out_shape=(jax.ShapeDtypeStruct((rows, lane), jnp.float32),
                   jax.ShapeDtypeStruct((rows, lane), jnp.float32),
                   jax.ShapeDtypeStruct((1, lane), jnp.float32)),
        grid=(n_tiles,),
        in_specs=[pl.BlockSpec((2, lane), lambda i: (0, 0)), row_spec, row_spec],
        out_specs=(row_spec, row_spec, lane_spec),
        compiler_params=pltpu.CompilerParams(dimension_semantics=("arbitrary",)),
    )(params, w_rl, wn_rl)

    # Per-channel reciprocal of clamp(abs_max, 1.0); gate -> no normalization.
    abs_max_c = jnp.max(amax_lane.reshape(lane // C, C), axis=0)
    inv_c = jnp.where(gate, 1.0, 1.0 / jnp.maximum(abs_max_c, 1.0))
    inv_lane = jnp.tile(inv_c, lane // C).reshape(1, lane).astype(jnp.float32)

    # ---- phase 3: rescale (elementwise, 'parallel' grid axis) -------------
    noisy_rl = pl.pallas_call(
        _scale_kernel,
        out_shape=jax.ShapeDtypeStruct((rows, lane), jnp.float32),
        grid=(n_tiles,),
        in_specs=[lane_spec, row_spec],
        out_specs=row_spec,
        compiler_params=pltpu.CompilerParams(dimension_semantics=("parallel",)),
    )(inv_lane, noisyu_rl)

    noisy = noisy_rl.reshape(n_pad)[:n].reshape(T, C)
    noise = noise_rl.reshape(n_pad)[:n].reshape(T, C)
    if squeeze:
        noisy, noise = noisy[:, 0], noise[:, 0]
    return noisy, noise


def _reference(waveform, snr, white_noise, mix_draw=None, mix_prob=1.0):
    """Pure-JAX mirror of the PyTorch forward (csv_file=None branch)."""
    squeeze = waveform.ndim == 1
    w = (waveform[:, None] if squeeze else waveform).astype(jnp.float32)
    wn = (white_noise[:, None] if squeeze else white_noise).astype(jnp.float32)
    snr_s = jnp.asarray(snr, jnp.float32).reshape(-1)[0]
    factor = 1.0 / (10.0 ** (snr_s / 20.0) + 1.0)
    clean_amp = jnp.mean(jnp.abs(w), axis=0, keepdims=True)          # [1, C]
    noise = factor * clean_amp * wn
    noisy = w * (1.0 - factor) + noise
    abs_max = jnp.max(jnp.abs(noisy), axis=0, keepdims=True)
    noisy = noisy / jnp.maximum(abs_max, 1.0)
    if mix_draw is not None:
        gate = jnp.asarray(mix_draw, jnp.float32).reshape(-1)[0] > mix_prob
        noisy = jnp.where(gate, w, noisy)
        noise = jnp.where(gate, jnp.zeros_like(w), noise)
    if squeeze:
        noisy, noise = noisy[:, 0], noise[:, 0]
    return noisy, noise


if __name__ == "__main__":
    key = jax.random.PRNGKey(0)
    k1, k2, k3, k4, k5, k6 = jax.random.split(key, 6)
    snr_low, snr_high = -5.0, 5.0

    # --- mono [time]: exercises padding + partial row-tile + abs_max<1 clamp ---
    T = 48_000
    wave_m = 0.1 * jax.random.normal(k1, (T,), jnp.float32)
    snr_m = jax.random.uniform(k2, (1,), jnp.float32) * (snr_high - snr_low) + snr_low
    wn_m = jax.random.normal(k3, (T,), jnp.float32)

    noisy_m, noise_m = add_noise(wave_m, snr_m, wn_m, tile_rows=64)
    jax.block_until_ready((noisy_m, noise_m))
    ref_ny, ref_nz = _reference(wave_m, snr_m, wn_m)
    assert noisy_m.shape == wave_m.shape and noise_m.shape == wave_m.shape
    assert jnp.allclose(noisy_m, ref_ny, atol=1e-5, rtol=1e-4)
    assert jnp.allclose(noise_m, ref_nz, atol=1e-5, rtol=1e-4)

    # --- [time, channels]: interleaved channel lanes + active normalization ---
    T2, C2 = 16_000, 4
    wave_c = 2.0 * jax.random.normal(k4, (T2, C2), jnp.float32)
    snr_c = jax.random.uniform(k5, (1,), jnp.float32) * (snr_high - snr_low) + snr_low
    wn_c = jax.random.normal(k6, (T2, C2), jnp.float32)
    mix_draw = jax.random.uniform(k2, (1,), jnp.float32)     # <= 1.0 -> mix path

    noisy_c, noise_c = add_noise(wave_c, snr_c, wn_c,
                                 mix_draw=mix_draw, mix_prob=1.0, tile_rows=64)
    jax.block_until_ready((noisy_c, noise_c))
    ref_ny_c, ref_nz_c = _reference(wave_c, snr_c, wn_c,
                                    mix_draw=mix_draw, mix_prob=1.0)
    assert noisy_c.shape == wave_c.shape and noise_c.shape == wave_c.shape
    assert jnp.allclose(noisy_c, ref_ny_c, atol=1e-5, rtol=1e-4)
    assert jnp.allclose(noise_c, ref_nz_c, atol=1e-5, rtol=1e-4)

    # --- mix_prob gate active: passthrough (waveform, zeros) -------------------
    noisy_g, noise_g = add_noise(wave_m, snr_m, wn_m,
                                 mix_draw=jnp.array([0.7], jnp.float32),
                                 mix_prob=0.5, tile_rows=64)
    jax.block_until_ready((noisy_g, noise_g))
    assert jnp.allclose(noisy_g, wave_m, atol=1e-6)
    assert jnp.allclose(noise_g, jnp.zeros_like(wave_m), atol=1e-7)

    print("KERNEL_OK")
</pallas_src>

<mosaic_0001>
module attributes {stable_mosaic.version = 11 : i64} {
  func.func @_sum_abs_kernel(%arg0: i32, %arg1: memref<64x512xf32, #tpu.memory_space<vmem>>, %arg2: memref<1x512xf32, #tpu.memory_space<vmem>>) attributes {dimension_semantics = [#tpu.dimension_semantics<arbitrary>], iteration_bounds = array<i64: 2>, scalar_prefetch = 0 : i64, scratch_operands = 0 : i64, tpu.core_type = #tpu.core_type<tc>, window_params = [{transform_indices = @transform_0, window_bounds = array<i64: 64, 512>}, {pipeline_mode = #tpu.pipeline_mode<synchronous>, transform_indices = @transform_1, window_bounds = array<i64: 1, 512>}]} {
    %c0_i32 = arith.constant 0 : i32
    %0 = arith.cmpi eq, %arg0, %c0_i32 : i32
    %1 = arith.extui %0 : i1 to i32
    %c0_i32_0 = arith.constant 0 : i32
    %2 = arith.cmpi ne, %1, %c0_i32_0 : i32
    scf.if %2 {
      %cst_7 = arith.constant 0.000000e+00 : f32
      %17 = vector.broadcast %cst_7 : f32 to vector<1x512xf32>
      %c0_8 = arith.constant 0 : index
      %c0_9 = arith.constant 0 : index
      %18 = vector.load %arg2[%c0_8, %c0_9] : memref<1x512xf32, #tpu.memory_space<vmem>>, vector<1x512xf32>
      tpu.vector_store %arg2[%c0_8, %c0_9], %17 {strides = array<i32>} : memref<1x512xf32, #tpu.memory_space<vmem>>, vector<1x512xf32>,
    } else {
    }
    %c64_i32 = arith.constant 64 : i32
    %3 = arith.muli %arg0, %c64_i32 : i32
    %c94_i32 = arith.constant 94 : i32
    %4 = arith.subi %c94_i32, %3 : i32
    %5 = tpu.iota {dimensions = array<i32: 0>} : vector<64x512xi32>
    %6 = vector.broadcast %4 : i32 to vector<64x512xi32>
    %7 = arith.cmpi slt, %5, %6 : vector<64x512xi32>
    %c0 = arith.constant 0 : index
    %c0_1 = arith.constant 0 : index
    %8 = vector.load %arg1[%c0, %c0_1] : memref<64x512xf32, #tpu.memory_space<vmem>>, vector<64x512xf32>
    %9 = math.absf %8 : vector<64x512xf32>
    %cst = arith.constant 0.000000e+00 : f32
    %10 = vector.broadcast %cst : f32 to vector<64x512xf32>
    %11 = arith.select %7, %9, %10 : vector<64x512xi1>, vector<64x512xf32>
    %c0_2 = arith.constant 0 : index
    %c0_3 = arith.constant 0 : index
    %12 = vector.load %arg2[%c0_2, %c0_3] : memref<1x512xf32, #tpu.memory_space<vmem>>, vector<1x512xf32>
    %cst_4 = arith.constant dense<0.000000e+00> : vector<512xf32>
    %13 = vector.multi_reduction <add>, %11, %cst_4 [0] : vector<64x512xf32> to vector<512xf32>
    %14 = vector.shape_cast %13 : vector<512xf32> to vector<1x512xf32>
    %15 = arith.addf %12, %14 : vector<1x512xf32>
    %c0_5 = arith.constant 0 : index
    %c0_6 = arith.constant 0 : index
    %16 = vector.load %arg2[%c0_5, %c0_6] : memref<1x512xf32, #tpu.memory_space<vmem>>, vector<1x512xf32>
    tpu.vector_store %arg2[%c0_5, %c0_6], %15 {strides = array<i32>} : memref<1x512xf32, #tpu.memory_space<vmem>>, vector<1x512xf32>,
    return
  }
  func.func @transform_0(%arg0: i32) -> (i32, i32) {
    %c0_i32 = arith.constant 0 : i32
    %c0_i32_0 = arith.constant 0 : i32
    return %arg0, %c0_i32 : i32, i32
  }
  func.func @transform_1(%arg0: i32) -> (i32, i32) {
    %c0_i32 = arith.constant 0 : i32
    %c0_i32_0 = arith.constant 0 : i32
    %c0_i32_1 = arith.constant 0 : i32
    return %c0_i32, %c0_i32_0 : i32, i32
  }
}

</mosaic_0001>

<llo_original>
// kernel: tpu_custom_call.1
$region0: #{tpu_custom_call.1}
  #allocation0 [shape = 'u32[]', space=smem, size = 0x4, offset = 0x4, fixed_abs, tag = 'smem constant byte address 0x4 - core index']
  #allocation1 [shape = 'u32[144,128]{1,0:T(1,128)}', space=vmem, size = 0x12000, scoped, tag = 'internal scratch']
  %s0 = inlined_call_operand.hbm [shape: f32[94,512], index: 0, kind: input, shape index: {}]
  %s1 = inlined_call_operand.hbm [shape: f32[1,512], index: 1, kind: output, shape index: {}]
  %s2 = sld [smem:[#allocation0]]
  $region45: #{tpu_custom_call.1} parent=0
    _
  %s4 = ssub.s32 1, %s2
  %s5 = scalar_select 0, %s4, %s2
  $region1: #{tpu_custom_call.1} parent=0
    #allocation2 [shape = 'u8[262144]{0}', space=vmem, size = 0x40000, scoped, tag = 'input window, operand 0']
    #allocation3 [shape = 's32[2]{0}', space=sflag, size = 0x8, scoped, tag = 'scoped memory for tpu_custom_call.1']
    #allocation4 [shape = 's32[2]{0}', space=sflag, size = 0x8, scoped, tag = 'scoped memory for tpu_custom_call.1']
    #allocation5 [shape = 'u8[2048]{0}', space=vmem, size = 0x800, scoped, tag = 'output window, operand 0, single buffered']
    %6 = vsyncpa [#allocation3], 0
    %s7 = scalar_lea.sflag [#allocation3], 1
    %8 = vsyncpa %s7, 0
    %9 = vsyncpa [#allocation4], 0
    loop: start=0, step=1, limit=4
    $region2: #{tpu_custom_call.1} parent=1 // loop_pre_header
      _
    $region3: #{tpu_custom_call.1} parent=1 // loop_header
      %s11 = sphi 0, %s15
      %p12 = scmp.ge.s32.totalorder %s11, 4
      %s21 = sphi 0, %s23
      %s24 = sphi 0, %s21
      %s25 = sphi 0, %s24
      %s41 = sphi 0, %s25
      %s45 = sphi 0, %s45
      %s47 = sphi 0, %s45
      %s48 = sphi 0, %s47
      %s62 = sphi 0, %s48
    $region4: #{tpu_custom_call.1} parent=1 // loop_header_branch
      %14 = sbr.rel (%p12) target = $region8
    $region5: #{tpu_custom_call.1} parent=1 // loop_body
      %s16 = ssub.s32 %s11, 1
      %s17 = ssub.s32 %s11, 2
      %s18 = sadd.s32 %s11, 1
      %s19 = ssub.s32 %s11, %s18
      %p20 = scmp.eq.s32.totalorder %s19, 0
      %s22 = sadd.s32 %s21, 1
      %s23 = scalar_select %p20, %s21, %s22
      %p26 = pneg %p20
      %p27 = scmp.eq.s32.totalorder %s11, 1
      %p28 = por %p26, %p27
      %p29 = scmp.ne.s32.totalorder %s21, %s24
      %p30 = scmp.eq.s32.totalorder %s11, 0
      %p31 = por %p29, %p30
      %p32 = scmp.ne.s32.totalorder %s21, %s24
      %p33 = scmp.eq.s32.totalorder %s16, 1
      %p34 = por %p32, %p33
      %p35 = scmp.ne.s32.totalorder %s24, %s25
      %p36 = scmp.eq.s32.totalorder %s16, 0
      %p37 = por %p35, %p36
      %p38 = scmp.ne.s32.totalorder %s24, %s25
      %p39 = scmp.eq.s32.totalorder %s17, 1
      %p40 = por %p38, %p39
      %p42 = scmp.ne.s32.totalorder %s25, %s41
      %p43 = scmp.eq.s32.totalorder %s17, 0
      %p44 = por %p42, %p43
      %s46 = sadd.s32 %s45, 1
      %p49 = scmp.eq.s32.totalorder %s11, 1
      %p50 = scmp.ne.s32.totalorder %s45, %s47
      %p51 = scmp.eq.s32.totalorder %s11, 0
      %p52 = por %p50, %p51
      %p53 = scmp.ne.s32.totalorder %s45, %s47
      %p54 = scmp.eq.s32.totalorder %s16, 1
      %p55 = por %p53, %p54
      %p56 = scmp.ne.s32.totalorder %s47, %s48
      %p57 = scmp.eq.s32.totalorder %s16, 0
      %p58 = por %p56, %p57
      %p59 = scmp.ne.s32.totalorder %s47, %s48
      %p60 = scmp.eq.s32.totalorder %s17, 1
      %p61 = por %p59, %p60
      %p63 = scmp.ne.s32.totalorder %s48, %s62
      %p64 = scmp.eq.s32.totalorder %s17, 0
      %p65 = por %p63, %p64
      %p66 = scmp.le.s32.totalorder 1, %s11
      %p67 = scmp.lt.s32.totalorder %s11, 3
      %p68 = pnand %p66, %p67
      %p69 = pneg %p68
      // Predicated region
      $region9: #{tpu_custom_call.1} parent=5 // pred_check
        _
      $region10: #{tpu_custom_call.1} parent=5 // pred_check_branch
        %71 = sbr.rel (%p68) target = $region12
      $region11: #{tpu_custom_call.1} parent=5 // pred_region
        %s72 = ssub.s32 %s11, 1
      $region12: #{tpu_custom_call.1} parent=5 // pred_fallthru
        _
      %p73 = scmp.lt.s32.totalorder %s11, 2
      // Predicated region
      $region13: #{tpu_custom_call.1} parent=5 // pred_check
        %p74 = pneg %p73
      $region14: #{tpu_custom_call.1} parent=5 // pred_check_branch
        %76 = sbr.rel (%p74) target = $region16
      $region15: #{tpu_custom_call.1} parent=5 // pred_region
        // Predicated region
        $region17: #{tpu_custom_call.1} parent=15 // pred_check
          %p77 = pneg %p31
        $region18: #{tpu_custom_call.1} parent=15 // pred_check_branch
          %79 = sbr.rel (%p77) target = $region20
        $region19: #{tpu_custom_call.1} parent=15 // pred_region
          %s80 = sand.u32 %s21, 1
          %s81 = scalar_lea.sflag [#allocation3], %s80
          %s82 = sand.u32 %s21, 1
          %s83 = smul.addr %s82, 256
          %s84 = scalar_lea.vmem [#allocation2], %s83
          %s85 = smul.u32 8, %s11
          %s86 = ssub.s32 12, %s85
          %p87 = scmp.lt.s32.totalorder %s86, 8
          %s88 = scalar_select %p87, %s86, 8
          %s89 = smul.u32 128, %s88
          %s90 = smul.u32 %s89, 4
          %s92 = ssub.s32 4096, %s90
          %93 = vsyncadd %s81, %s92
          %p94 = scmp.ne.s32.totalorder 0, %s90
          %s95 = smul.addr %s85, 4
          %s96 = smul.addr %s95, 128
          %s97 = scalar_lea.hbm %s0, %s96
          %s98 = smul.u32 32, %s88
          %s99 = sshll.u32 %s84, 4
          %s100 = int_to_ptr.vmem [resolvable:$true] %s99
          %s101 = sshll.u32 %s98, 4
          %105 = dma.hbm_to_vmem [thread:$0]  (%p94), %s97, %s101, %s100, %s81, 512, 512, 32
        $region20: #{tpu_custom_call.1} parent=15 // pred_fallthru
          _
      $region16: #{tpu_custom_call.1} parent=5 // pred_fallthru
        _
      %p106 = scmp.le.s32.totalorder 1, %s11
      %p107 = scmp.lt.s32.totalorder %s11, 3
      %p108 = pnand %p106, %p107
      %p109 = pneg %p108
      // Predicated region
      $region21: #{tpu_custom_call.1} parent=5 // pred_check
        _
      $region22: #{tpu_custom_call.1} parent=5 // pred_check_branch
        %111 = sbr.rel (%p108) target = $region24
      $region23: #{tpu_custom_call.1} parent=5 // pred_region
        %s112 = ssub.s32 %s11, 1
        %s113 = sand.u32 %s24, 1
        %s114 = scalar_lea.sflag [#allocation3], %s113
        %s115 = sand.u32 %s24, 1
        %s116 = smul.addr %s115, 256
        %s117 = scalar_lea.vmem [#allocation2], %s116
        // Predicated region
        $region25: #{tpu_custom_call.1} parent=23 // pred_check
          %p118 = pneg %p37
        $region26: #{tpu_custom_call.1} parent=23 // pred_check_branch
          %120 = sbr.rel (%p118) target = $region28
        $region27: #{tpu_custom_call.1} parent=23 // pred_region
          %121 = dma.done %s114, 4096
        $region28: #{tpu_custom_call.1} parent=23 // pred_fallthru
          _
        %s122 = sand.u32 %s24, 1
        %s123 = scalar_lea.sflag [#allocation3], %s122
        %s124 = sand.u32 %s24, 1
        %s125 = smul.addr %s124, 256
        %s126 = scalar_lea.vmem [#allocation2], %s125
        %p127 = pneg %p37
        %p128 = pneg %p34
        %p129 = pneg %p58
        %p130 = pneg %p55
        %s131 = smul.u32 8, %s16
        %s132 = ssub.s32 12, %s131
        %p133 = scmp.lt.s32.totalorder %s132, 8
        %s134 = scalar_select %p133, %s132, 8
        %s135 = smul.u32 128, %s134
        %s136 = smul.u32 %s135, 4
        %p137 = scmp.eq.s32.totalorder %s16, 0
        // Predicated region
        $region29: #{tpu_custom_call.1} parent=23 // pred_check
          %p138 = pneg %p137
        $region30: #{tpu_custom_call.1} parent=23 // pred_check_branch
          %140 = sbr.rel (%p138) target = $region32
        $region31: #{tpu_custom_call.1} parent=23 // pred_region
          %v141 = vlaneseq
          %vm142 = vcmp.ge.s32.totalorder %v141, 0
          %vm143 = vcmp.lt.s32.totalorder %v141, 512
          %vm144 = vmand %vm142, %vm143
          %145 = vst.msk [vmem:[#allocation5] sm:$0xf] %vm144, 0.0
        $region32: #{tpu_custom_call.1} parent=23 // pred_fallthru
          _
        %s146 = smul.u32 %s16, 64
        %s147 = ssub.s32 94, %s146
        %v148 = vlaneseq
        %v149 = vshrl.u32 %v148, 7
        %v150 = vadd.s32 %v149, 8
        %v151 = vadd.s32 %v149, 16
        %v152 = vadd.s32 %v149, 24
        %v153 = vadd.s32 %v149, 32
        %v154 = vadd.s32 %v149, 40
        %v155 = vadd.s32 %v149, 48
        %v156 = vadd.s32 %v149, 56
        %v157 = vstv %s147
        %vm158 = vcmp.lt.s32.totalorder %v149, %v157
        %vm159 = vcmp.lt.s32.totalorder %v150, %v157
        %vm160 = vcmp.lt.s32.totalorder %v151, %v157
        %vm161 = vcmp.lt.s32.totalorder %v152, %v157
        %vm162 = vcmp.lt.s32.totalorder %v153, %v157
        %vm163 = vcmp.lt.s32.totalorder %v154, %v157
        %vm164 = vcmp.lt.s32.totalorder %v155, %v157
        %vm165 = vcmp.lt.s32.totalorder %v156, %v157
        %v166 = vld [vmem:[%s117] sm:$0xff]
        %v167 = vld [vmem:[%s117 + $0x8] sm:$0xff]
        %v168 = vld [vmem:[%s117 + $0x10] sm:$0xff]
        %v169 = vld [vmem:[%s117 + $0x18] sm:$0xff]
        %v170 = vld [vmem:[%s117 + $0x20] sm:$0xff]
        %v171 = vld [vmem:[%s117 + $0x28] sm:$0xff]
        %v172 = vld [vmem:[%s117 + $0x30] sm:$0xff]
        %v173 = vld [vmem:[%s117 + $0x38] sm:$0xff]
        %v174 = vld [vmem:[%s117 + $0x40] sm:$0xff]
        %v175 = vld [vmem:[%s117 + $0x48] sm:$0xff]
        %v176 = vld [vmem:[%s117 + $0x50] sm:$0xff]
        %v177 = vld [vmem:[%s117 + $0x58] sm:$0xff]
        %v178 = vld [vmem:[%s117 + $0x60] sm:$0xff]
        %v179 = vld [vmem:[%s117 + $0x68] sm:$0xff]
        %v180 = vld [vmem:[%s117 + $0x70] sm:$0xff]
        %v181 = vld [vmem:[%s117 + $0x78] sm:$0xff]
        %v182 = vld [vmem:[%s117 + $0x80] sm:$0xff]
        %v183 = vld [vmem:[%s117 + $0x88] sm:$0xff]
        %v184 = vld [vmem:[%s117 + $0x90] sm:$0xff]
        %v185 = vld [vmem:[%s117 + $0x98] sm:$0xff]
        %v186 = vld [vmem:[%s117 + $0xa0] sm:$0xff]
        %v187 = vld [vmem:[%s117 + $0xa8] sm:$0xff]
        %v188 = vld [vmem:[%s117 + $0xb0] sm:$0xff]
        %v189 = vld [vmem:[%s117 + $0xb8] sm:$0xff]
        %v190 = vld [vmem:[%s117 + $0xc0] sm:$0xff]
        %v191 = vld [vmem:[%s117 + $0xc8] sm:$0xff]
        %v192 = vld [vmem:[%s117 + $0xd0] sm:$0xff]
        %v193 = vld [vmem:[%s117 + $0xd8] sm:$0xff]
        %v194 = vld [vmem:[%s117 + $0xe0] sm:$0xff]
        %v195 = vld [vmem:[%s117 + $0xe8] sm:$0xff]
        %v196 = vld [vmem:[%s117 + $0xf0] sm:$0xff]
        %v197 = vld [vmem:[%s117 + $0xf8] sm:$0xff]
        %v198 = vand.u32 2147483647, %v166
        %v199 = vand.u32 2147483647, %v167
        %v200 = vand.u32 2147483647, %v168
        %v201 = vand.u32 2147483647, %v169
        %v202 = vand.u32 2147483647, %v170
        %v203 = vand.u32 2147483647, %v171
        %v204 = vand.u32 2147483647, %v172
        %v205 = vand.u32 2147483647, %v173
        %v206 = vand.u32 2147483647, %v174
        %v207 = vand.u32 2147483647, %v175
        %v208 = vand.u32 2147483647, %v176
        %v209 = vand.u32 2147483647, %v177
        %v210 = vand.u32 2147483647, %v178
        %v211 = vand.u32 2147483647, %v179
        %v212 = vand.u32 2147483647, %v180
        %v213 = vand.u32 2147483647, %v181
        %v214 = vand.u32 2147483647, %v182
        %v215 = vand.u32 2147483647, %v183
        %v216 = vand.u32 2147483647, %v184
        %v217 = vand.u32 2147483647, %v185
        %v218 = vand.u32 2147483647, %v186
        %v219 = vand.u32 2147483647, %v187
        %v220 = vand.u32 2147483647, %v188
        %v221 = vand.u32 2147483647, %v189
        %v222 = vand.u32 2147483647, %v190
        %v223 = vand.u32 2147483647, %v191
        %v224 = vand.u32 2147483647, %v192
        %v225 = vand.u32 2147483647, %v193
        %v226 = vand.u32 2147483647, %v194
        %v227 = vand.u32 2147483647, %v195
        %v228 = vand.u32 2147483647, %v196
        %v229 = vand.u32 2147483647, %v197
        %v230 = vsel %vm158, %v198, 0.0
        %v231 = vsel %vm158, %v199, 0.0
        %v232 = vsel %vm158, %v200, 0.0
        %v233 = vsel %vm158, %v201, 0.0
        %v234 = vsel %vm159, %v202, 0.0
        %v235 = vsel %vm159, %v203, 0.0
        %v236 = vsel %vm159, %v204, 0.0
        %v237 = vsel %vm159, %v205, 0.0
        %v238 = vsel %vm160, %v206, 0.0
        %v239 = vsel %vm160, %v207, 0.0
        %v240 = vsel %vm160, %v208, 0.0
        %v241 = vsel %vm160, %v209, 0.0
        %v242 = vsel %vm161, %v210, 0.0
        %v243 = vsel %vm161, %v211, 0.0
        %v244 = vsel %vm161, %v212, 0.0
        %v245 = vsel %vm161, %v213, 0.0
        %v246 = vsel %vm162, %v214, 0.0
        %v247 = vsel %vm162, %v215, 0.0
        %v248 = vsel %vm162, %v216, 0.0
        %v249 = vsel %vm162, %v217, 0.0
        %v250 = vsel %vm163, %v218, 0.0
        %v251 = vsel %vm163, %v219, 0.0
        %v252 = vsel %vm163, %v220, 0.0
        %v253 = vsel %vm163, %v221, 0.0
        %v254 = vsel %vm164, %v222, 0.0
        %v255 = vsel %vm164, %v223, 0.0
        %v256 = vsel %vm164, %v224, 0.0
        %v257 = vsel %vm164, %v225, 0.0
        %v258 = vsel %vm165, %v226, 0.0
        %v259 = vsel %vm165, %v227, 0.0
        %v260 = vsel %vm165, %v228, 0.0
        %v261 = vsel %vm165, %v229, 0.0
        %v262 = vld [vmem:[#allocation5] sm:$0xf]
        %v263 = vadd.f32 %v230, %v234
        %v264 = vadd.f32 %v263, %v238
        %v265 = vadd.f32 %v264, %v242
        %v266 = vadd.f32 %v265, %v246
        %v267 = vadd.f32 %v266, %v250
        %v268 = vadd.f32 %v267, %v254
        %v269 = vadd.f32 %v268, %v258
        %v270 = vrot.slane %v269, 4
        %v271 = vadd.f32 %v269, %v270
        %v272 = vrot.slane %v271, 2
        %v273 = vadd.f32 %v271, %v272
        %v274 = vrot.slane %v273, 1
        %v275 = vadd.f32 %v273, %v274
        %v276 = vadd.f32 %v231, %v235
        %v277 = vadd.f32 %v276, %v239
        %v278 = vadd.f32 %v277, %v243
        %v279 = vadd.f32 %v278, %v247
        %v280 = vadd.f32 %v279, %v251
        %v281 = vadd.f32 %v280, %v255
        %v282 = vadd.f32 %v281, %v259
        %v283 = vrot.slane %v282, 4
        %v284 = vadd.f32 %v282, %v283
        %v285 = vrot.slane %v284, 2
        %v286 = vadd.f32 %v284, %v285
        %v287 = vrot.slane %v286, 1
        %v288 = vadd.f32 %v286, %v287
        %v289 = vadd.f32 %v232, %v236
        %v290 = vadd.f32 %v289, %v240
        %v291 = vadd.f32 %v290, %v244
        %v292 = vadd.f32 %v291, %v248
        %v293 = vadd.f32 %v292, %v252
        %v294 = vadd.f32 %v293, %v256
        %v295 = vadd.f32 %v294, %v260
        %v296 = vrot.slane %v295, 4
        %v297 = vadd.f32 %v295, %v296
        %v298 = vrot.slane %v297, 2
        %v299 = vadd.f32 %v297, %v298
        %v300 = vrot.slane %v299, 1
        %v301 = vadd.f32 %v299, %v300
        %v302 = vadd.f32 %v233, %v237
        %v303 = vadd.f32 %v302, %v241
        %v304 = vadd.f32 %v303, %v245
        %v305 = vadd.f32 %v304, %v249
        %v306 = vadd.f32 %v305, %v253
        %v307 = vadd.f32 %v306, %v257
        %v308 = vadd.f32 %v307, %v261
        %v309 = vrot.slane %v308, 4
        %v310 = vadd.f32 %v308, %v309
        %v311 = vrot.slane %v310, 2
        %v312 = vadd.f32 %v310, %v311
        %v313 = vrot.slane %v312, 1
        %v314 = vadd.f32 %v312, %v313
        %v319 = vcombine.low %v275, %v288
        %v320 = vcombine.low %v301, %v314
        %v322 = vunpack.c.l.s4 1966171168
        %v323 = vunpack.c.0.s8 %v322
        %v324 = vlaneseq
        %v325 = vshrl.u32 %v324, 7
        %v326 = vsub.s32 %v323, %v325
        %v327 = vrot.slane %v319, %v326
        %v329 = vunpack.c.l.s4 1966171168
        %v330 = vunpack.c.0.s8 %v329
        %v331 = vlaneseq
        %v332 = vshrl.u32 %v331, 7
        %v333 = vsub.s32 %v330, %v332
        %v334 = vrot.slane %v320, %v333
        %v335 = vcombine.low %v327, %v334
        %v337 = vunpack.c.l.s4 1966171168
        %v338 = vunpack.c.0.s8 %v337
        %v339 = vlaneseq
        %v340 = vshrl.u32 %v339, 7
        %v341 = vsub.s32 %v338, %v340
        %v342 = vrot.slane %v335, %v341
        %v344 = vadd.f32 %v262, %v342
        %v345 = vlaneseq
        %vm346 = vcmp.ge.s32.totalorder %v345, 0
        %vm347 = vcmp.lt.s32.totalorder %v345, 512
        %vm348 = vmand %vm346, %vm347
        %349 = vst.msk [vmem:[#allocation5] sm:$0xf] %vm348, %v344
        // Predicated region
        $region33: #{tpu_custom_call.1} parent=23 // pred_check
          %p350 = pneg %p55
        $region34: #{tpu_custom_call.1} parent=23 // pred_check_branch
          %352 = sbr.rel (%p350) target = $region36
        $region35: #{tpu_custom_call.1} parent=23 // pred_region
          %s354 = ssub.s32 64, 64
          %355 = vsyncadd [#allocation4], %s354
          %s357 = sshll.u32 [#allocation5], 4
          %s358 = int_to_ptr.vmem [resolvable:$true] %s357
          %360 = dma.vmem_to_hbm [thread:$0]  %s358, 64, %s1, [#allocation4]
        $region36: #{tpu_custom_call.1} parent=23 // pred_fallthru
          _
        // Predicated region
        $region37: #{tpu_custom_call.1} parent=23 // pred_check
          %p361 = pneg %p55
        $region38: #{tpu_custom_call.1} parent=23 // pred_check_branch
          %363 = sbr.rel (%p361) target = $region40
        $region39: #{tpu_custom_call.1} parent=23 // pred_region
          %364 = dma.done [#allocation4], 64
        $region40: #{tpu_custom_call.1} parent=23 // pred_fallthru
          _
      $region24: #{tpu_custom_call.1} parent=5 // pred_fallthru
        _
      %p365 = scmp.le.s32.totalorder 2, %s11
      // Predicated region
      $region41: #{tpu_custom_call.1} parent=5 // pred_check
        %p366 = pneg %p365
      $region42: #{tpu_custom_call.1} parent=5 // pred_check_branch
        %368 = sbr.rel (%p366) target = $region44
      $region43: #{tpu_custom_call.1} parent=5 // pred_region
        %s369 = ssub.s32 %s11, 2
      $region44: #{tpu_custom_call.1} parent=5 // pred_fallthru
        _
    $region6: #{tpu_custom_call.1} parent=1 // loop_footer
      %s15 = sadd.s32 1, %s11
    $region7: #{tpu_custom_call.1} parent=1 // loop_footer_branch
      %10 = sbr.rel target = $region3
    $region8: #{tpu_custom_call.1} parent=1 // loop_exit
      _
    %370 = vsyncpa [#allocation3], 1
    %s371 = scalar_lea.sflag [#allocation3], 1
    %372 = vsyncpa %s371, 1
    %373 = vsyncpa [#allocation4], 1
    %s374 = scalar_lea.sflag [#allocation4], 1
    %375 = vsyncpa %s374, 1

</llo_original>
